<compile_context>
chip_gen: v6e
topology: v6e:2x2x1
jax: 0.10.0
libtpu: 0.0.40
codegen_flags: <defaults>
</compile_context>

<pallas_src>
import functools

import jax
import jax.numpy as jnp
from jax.experimental import pallas as pl
from jax.experimental.pallas import tpu as pltpu


# ----------------------------------------------------------------------------- kernel

def _silhouette_iou_kernel(coef_ref, ref_ref, out_ref, *,
                           F, H, W, tr, fused, n_acc=4, unroll_limit=64):
    """Rasterize one lane-dense pixel tile and emit partial IoU sums (or the loss).

    coef_ref : SMEM (9*F,) f32  per-face edge coefficients (scalar-prefetched)
               [a0,b0,c0, a1,b1,c1, a2,b2,c2] * F, winding-normalized; invalid /
               padded faces have edge 0 forced to a0=b0=0, c0=-1 (never cover).
    ref_ref  : (tr, 128) f32    tile of the reference mask (lane-dense layout)
    out_ref  : (1, 8, 128) f32  fused: lane 0 of sublane 0 = loss
                                else : lane 0 = sum(image*ref), lane 1 = sum(image)
    """
    # Lane-dense pixel coordinates generated in-kernel (no xp/yp DMA streams).
    row = jax.lax.broadcasted_iota(jnp.int32, (tr, 128), 0)
    lane = jax.lax.broadcasted_iota(jnp.int32, (tr, 128), 1)
    p = (pl.program_id(0) * tr + row) * 128 + lane          # flat pixel index
    p_f = p.astype(jnp.float32)
    # f32 div/floor is exact for H*W < 2^24 (plenty for real image sizes).
    iy = jnp.floor(p_f / jnp.float32(W))
    ix = p_f - iy * jnp.float32(W)
    xp = (2.0 * ix + 1.0 - W) / W
    yp = (2.0 * iy + 1.0 - H) / H

    def face_min(f):
        base = f * 9
        a0 = coef_ref[base + 0]; b0 = coef_ref[base + 1]; c0 = coef_ref[base + 2]
        a1 = coef_ref[base + 3]; b1 = coef_ref[base + 4]; c1 = coef_ref[base + 5]
        a2 = coef_ref[base + 6]; b2 = coef_ref[base + 7]; c2 = coef_ref[base + 8]
        e0 = a0 * xp + b0 * yp + c0
        e1 = a1 * xp + b1 * yp + c1
        e2 = a2 * xp + b2 * yp + c2
        return jnp.minimum(e0, jnp.minimum(e1, e2))

    neg = jnp.full((tr, 128), -1.0, dtype=jnp.float32)
    accs = [neg] * n_acc                                      # interleaved accumulators
    if F <= unroll_limit:
        # Small static meshes: flat unrolled trace, static SMEM scalar indices.
        for f in range(F):
            accs[f % n_acc] = jnp.maximum(accs[f % n_acc], face_min(f))
    else:
        # Large meshes: rolled loop, n_acc faces per step (F padded to n_acc).
        def body(i, carry):
            return tuple(jnp.maximum(carry[j], face_min(i * n_acc + j))
                         for j in range(n_acc))
        accs = list(jax.lax.fori_loop(0, F // n_acc, body, tuple(accs), unroll=8))

    covered = accs[0]
    for a in accs[1:]:
        covered = jnp.maximum(covered, a)
    image = (covered >= 0.0).astype(jnp.float32)              # 0/1 coverage, (tr, 128)

    ref = ref_ref[...]
    inter = jnp.sum(image * ref)                              # abs() unnecessary (>= 0)
    img_sum = jnp.sum(image)

    lane_o = jax.lax.broadcasted_iota(jnp.int32, out_ref.shape, 2)
    if fused:
        # Single tile covers the whole image: fold the whole epilogue in here.
        ref_sum = jnp.sum(ref)
        union = img_sum + ref_sum - inter
        loss = jnp.where(union > 0.0, -inter / union, 0.0)
        out_ref[...] = jnp.where(lane_o == 0, loss, 0.0)
    else:
        out_ref[...] = jnp.where(lane_o == 0, inter,
                                 jnp.where(lane_o == 1, img_sum, 0.0))


def _pick_tile_rows(n_rows, min_rows=32, cap=512):
    """Tile height: divisor of n_rows, (8,128)-rule safe, >= 4 vregs and >= 2 tiles
    whenever the image allows (v7x megacore), capped for VMEM friendliness."""
    cands = [d for d in range(1, n_rows + 1)
             if n_rows % d == 0 and (d % 8 == 0 or d == n_rows)]
    multi = [d for d in cands if n_rows // d >= 2 and min_rows <= d <= cap]
    if multi:
        return max(multi)
    small = [d for d in cands if d <= cap]
    if small:
        return max(small)
    return n_rows


def silhouette_iou_loss(coeffs_flat, image_ref, H, W):
    """Run the Pallas kernel and return the scalar IoU loss."""
    assert (H * W) % 128 == 0, "lane-dense layout needs H*W % 128 == 0"
    n_rows = (H * W) // 128
    F = coeffs_flat.shape[0] // 9
    tr = _pick_tile_rows(n_rows)
    num_tiles = n_rows // tr
    fused = (num_tiles == 1)
    ref_flat = image_ref.reshape(n_rows, 128).astype(jnp.float32)

    kernel = functools.partial(_silhouette_iou_kernel,
                               F=F, H=H, W=W, tr=tr, fused=fused)
    out = pl.pallas_call(
        kernel,
        out_shape=jax.ShapeDtypeStruct((num_tiles, 8, 128), jnp.float32),
        grid_spec=pltpu.PrefetchScalarGridSpec(
            num_scalar_prefetch=1,                            # edge coeffs -> SMEM once
            grid=(num_tiles,),
            in_specs=[
                pl.BlockSpec((tr, 128), lambda i, coef: (i, 0)),      # ref mask tile
            ],
            out_specs=pl.BlockSpec((1, 8, 128), lambda i, coef: (i, 0, 0)),
        ),
        compiler_params=pltpu.CompilerParams(
            dimension_semantics=("parallel",)),               # no cross-tile carry
    )(coeffs_flat, ref_flat)

    if fused:
        return out[0, 0, 0]
    inter = jnp.sum(out[:, 0, 0])
    img_sum = jnp.sum(out[:, 0, 1])
    ref_sum = jnp.sum(image_ref)
    union = img_sum + ref_sum - inter
    # Guard: empty render + empty mask would give -0/0 = NaN in the original.
    return jnp.where(union > 0.0, -inter / union, 0.0)


# --------------------------------------------------------------------------- glue (JAX)

def project_vertices(vertices, R, t, K, image_size, eps=1e-9):
    """neural_renderer 'projection' camera: normalized (u, v, z) per vertex."""
    # vertices (1,V,3), R (1,3,3), t (1,3), K (1,3,3)
    v = jnp.matmul(vertices, jnp.swapaxes(R, 1, 2)) + t[:, None, :]
    x, y, z = v[..., 0], v[..., 1], v[..., 2]
    x_ = x / (z + eps)
    y_ = y / (z + eps)
    vv = jnp.stack([x_, y_, jnp.ones_like(z)], axis=-1)
    vv = jnp.matmul(vv, jnp.swapaxes(K, 1, 2))
    u, vpix = vv[..., 0], vv[..., 1]
    # TODO(synk): neural_renderer applies an extra vertical flip inside its CUDA
    # rasterizer output; orientation here follows its projection() only.
    vpix = image_size - vpix
    u = 2.0 * (u - image_size / 2.0) / image_size
    vpix = 2.0 * (vpix - image_size / 2.0) / image_size
    return jnp.stack([u, vpix, z], axis=-1)           # (1, V, 3)


def pack_edge_coeffs(proj_vertices, faces, pad_to=4):
    """Per-face edge coefficients, winding-normalized, flat (9*F_pad,) f32."""
    tri = proj_vertices[0][faces[0]]                  # (F, 3, 3)
    x0, y0 = tri[:, 0, 0], tri[:, 0, 1]
    x1, y1 = tri[:, 1, 0], tri[:, 1, 1]
    x2, y2 = tri[:, 2, 0], tri[:, 2, 1]
    zs = tri[:, :, 2]
    area = (x1 - x0) * (y2 - y0) - (y1 - y0) * (x2 - x0)
    # TODO(synk): nr also performs near/far-plane clipping; here faces fully in
    # front of the camera (z > 0) are kept, degenerate faces dropped.
    valid = (jnp.min(zs, axis=1) > 0.0) & (jnp.abs(area) > 1e-12)
    s = jnp.where(area >= 0.0, 1.0, -1.0)             # winding normalization

    def edge(xa, ya, xb, yb):
        a = -(yb - ya) * s
        b = (xb - xa) * s
        c = (xa * yb - xb * ya) * s
        return a, b, c

    a0, b0, c0 = edge(x0, y0, x1, y1)
    a1, b1, c1 = edge(x1, y1, x2, y2)
    a2, b2, c2 = edge(x2, y2, x0, y0)
    # Invalid faces: force edge 0 to be always-negative so they never cover a pixel.
    a0 = jnp.where(valid, a0, 0.0)
    b0 = jnp.where(valid, b0, 0.0)
    c0 = jnp.where(valid, c0, -1.0)
    coeffs = jnp.stack([a0, b0, c0, a1, b1, c1, a2, b2, c2], axis=1)   # (F, 9)
    F = coeffs.shape[0]
    F_pad = ((F + pad_to - 1) // pad_to) * pad_to     # pad so F % n_acc == 0
    if F_pad != F:
        pad_row = jnp.array([0., 0., -1., 0., 0., -1., 0., 0., -1.], jnp.float32)
        coeffs = jnp.concatenate(
            [coeffs, jnp.tile(pad_row[None, :], (F_pad - F, 1))], axis=0)
    return coeffs.reshape(-1).astype(jnp.float32)


@jax.jit
def model_forward(vertices, faces, R, t, K, image_ref, image_size):
    proj = project_vertices(vertices, R, t, K, image_size)
    coeffs = pack_edge_coeffs(proj, faces)
    H, W = image_ref.shape
    return silhouette_iou_loss(coeffs, image_ref, H, W)


# ----------------------------------------------------------------------------- main

if __name__ == "__main__":
    IMAGE_SIZE = 32                       # small image, H = W = 32
    key = jax.random.PRNGKey(0)
    k_vert, k_mask = jax.random.split(key)

    # Deterministic "mesh": a jittered unit cube (8 vertices, 12 triangular faces).
    base = 0.5 * jnp.array(
        [[-1, -1, -1], [1, -1, -1], [1, 1, -1], [-1, 1, -1],
         [-1, -1, 1], [1, -1, 1], [1, 1, 1], [-1, 1, 1]], jnp.float32)
    vertices = (base + 0.05 * jax.random.normal(k_vert, base.shape))[None]  # (1, 8, 3)

    faces = jnp.array(
        [[0, 1, 2], [0, 2, 3], [4, 6, 5], [4, 7, 6],
         [0, 4, 5], [0, 5, 1], [1, 5, 6], [1, 6, 2],
         [2, 6, 7], [2, 7, 3], [3, 7, 4], [3, 4, 0]], jnp.int32)[None]      # (1, 12, 3)

    # Camera: intrinsics K, rotation R (parameter, init = identity), translation t.
    S = float(IMAGE_SIZE)
    K = jnp.array([[S, 0.0, S / 2.0],
                   [0.0, S, S / 2.0],
                   [0.0, 0.0, 1.0]], jnp.float32)[None]                      # (1, 3, 3)
    R = jnp.eye(3, dtype=jnp.float32)[None]                                  # (1, 3, 3)
    t = jnp.array([[0.0, 0.0, 3.0]], jnp.float32)                            # (1, 3)

    # Reference full-size mask (image_ref buffer), deterministic random binary.
    mask_full_size = (jax.random.uniform(k_mask, (IMAGE_SIZE, IMAGE_SIZE)) > 0.5
                      ).astype(jnp.float32)

    loss = model_forward(vertices, faces, R, t, K, mask_full_size, S)
    loss = jax.block_until_ready(loss)
    assert jnp.isfinite(loss), "loss is not finite"
    print("KERNEL_OK")
</pallas_src>

<mosaic_0001>
module attributes {stable_mosaic.version = 11 : i64} {
  func.func @_silhouette_iou_kernel(%arg0: i32, %arg1: memref<108xf32, #tpu.memory_space<smem>>, %arg2: memref<8x128xf32, #tpu.memory_space<vmem>>, %arg3: memref<1x8x128xf32, #tpu.memory_space<vmem>>) attributes {dimension_semantics = [#tpu.dimension_semantics<parallel>], iteration_bounds = array<i64: 1>, scalar_prefetch = 1 : i64, scratch_operands = 0 : i64, tpu.core_type = #tpu.core_type<tc>, window_params = [{transform_indices = @transform_0, window_bounds = array<i64: 8, 128>}, {transform_indices = @transform_1, window_bounds = array<i64: 1, 8, 128>}]} {
    %0 = tpu.iota {dimensions = array<i32: 0>} : vector<8x128xi32>
    %1 = tpu.iota {dimensions = array<i32: 1>} : vector<8x128xi32>
    %c8_i32 = arith.constant 8 : i32
    %2 = arith.muli %arg0, %c8_i32 : i32
    %3 = vector.broadcast %2 : i32 to vector<8x128xi32>
    %4 = arith.addi %3, %0 : vector<8x128xi32>
    %c128_i32 = arith.constant 128 : i32
    %5 = vector.broadcast %c128_i32 : i32 to vector<8x128xi32>
    %6 = arith.muli %4, %5 : vector<8x128xi32>
    %7 = arith.addi %6, %1 : vector<8x128xi32>
    %8 = arith.sitofp %7 : vector<8x128xi32> to vector<8x128xf32>
    %cst = arith.constant 3.200000e+01 : f32
    %9 = vector.broadcast %cst : f32 to vector<8x128xf32>
    %10 = arith.divf %8, %9 : vector<8x128xf32>
    %11 = math.floor %10 : vector<8x128xf32>
    %cst_0 = arith.constant 3.200000e+01 : f32
    %12 = vector.broadcast %cst_0 : f32 to vector<8x128xf32>
    %13 = arith.mulf %11, %12 : vector<8x128xf32>
    %14 = arith.subf %8, %13 : vector<8x128xf32>
    %cst_1 = arith.constant 2.000000e+00 : f32
    %15 = vector.broadcast %cst_1 : f32 to vector<8x128xf32>
    %16 = arith.mulf %15, %14 : vector<8x128xf32>
    %cst_2 = arith.constant 1.000000e+00 : f32
    %17 = vector.broadcast %cst_2 : f32 to vector<8x128xf32>
    %18 = arith.addf %16, %17 : vector<8x128xf32>
    %cst_3 = arith.constant 3.200000e+01 : f32
    %19 = vector.broadcast %cst_3 : f32 to vector<8x128xf32>
    %20 = arith.subf %18, %19 : vector<8x128xf32>
    %cst_4 = arith.constant 3.200000e+01 : f32
    %21 = vector.broadcast %cst_4 : f32 to vector<8x128xf32>
    %22 = arith.divf %20, %21 : vector<8x128xf32>
    %cst_5 = arith.constant 2.000000e+00 : f32
    %23 = vector.broadcast %cst_5 : f32 to vector<8x128xf32>
    %24 = arith.mulf %23, %11 : vector<8x128xf32>
    %cst_6 = arith.constant 1.000000e+00 : f32
    %25 = vector.broadcast %cst_6 : f32 to vector<8x128xf32>
    %26 = arith.addf %24, %25 : vector<8x128xf32>
    %cst_7 = arith.constant 3.200000e+01 : f32
    %27 = vector.broadcast %cst_7 : f32 to vector<8x128xf32>
    %28 = arith.subf %26, %27 : vector<8x128xf32>
    %cst_8 = arith.constant 3.200000e+01 : f32
    %29 = vector.broadcast %cst_8 : f32 to vector<8x128xf32>
    %30 = arith.divf %28, %29 : vector<8x128xf32>
    %cst_9 = arith.constant -1.000000e+00 : f32
    %31 = vector.broadcast %cst_9 : f32 to vector<8x128xf32>
    %c0 = arith.constant 0 : index
    %32 = memref.load %arg1[%c0] : memref<108xf32, #tpu.memory_space<smem>>
    %c1 = arith.constant 1 : index
    %33 = memref.load %arg1[%c1] : memref<108xf32, #tpu.memory_space<smem>>
    %c2 = arith.constant 2 : index
    %34 = memref.load %arg1[%c2] : memref<108xf32, #tpu.memory_space<smem>>
    %c3 = arith.constant 3 : index
    %35 = memref.load %arg1[%c3] : memref<108xf32, #tpu.memory_space<smem>>
    %c4 = arith.constant 4 : index
    %36 = memref.load %arg1[%c4] : memref<108xf32, #tpu.memory_space<smem>>
    %c5 = arith.constant 5 : index
    %37 = memref.load %arg1[%c5] : memref<108xf32, #tpu.memory_space<smem>>
    %c6 = arith.constant 6 : index
    %38 = memref.load %arg1[%c6] : memref<108xf32, #tpu.memory_space<smem>>
    %c7 = arith.constant 7 : index
    %39 = memref.load %arg1[%c7] : memref<108xf32, #tpu.memory_space<smem>>
    %c8 = arith.constant 8 : index
    %40 = memref.load %arg1[%c8] : memref<108xf32, #tpu.memory_space<smem>>
    %41 = vector.broadcast %32 : f32 to vector<8x128xf32>
    %42 = arith.mulf %41, %22 : vector<8x128xf32>
    %43 = vector.broadcast %33 : f32 to vector<8x128xf32>
    %44 = arith.mulf %43, %30 : vector<8x128xf32>
    %45 = arith.addf %42, %44 : vector<8x128xf32>
    %46 = vector.broadcast %34 : f32 to vector<8x128xf32>
    %47 = arith.addf %45, %46 : vector<8x128xf32>
    %48 = vector.broadcast %35 : f32 to vector<8x128xf32>
    %49 = arith.mulf %48, %22 : vector<8x128xf32>
    %50 = vector.broadcast %36 : f32 to vector<8x128xf32>
    %51 = arith.mulf %50, %30 : vector<8x128xf32>
    %52 = arith.addf %49, %51 : vector<8x128xf32>
    %53 = vector.broadcast %37 : f32 to vector<8x128xf32>
    %54 = arith.addf %52, %53 : vector<8x128xf32>
    %55 = vector.broadcast %38 : f32 to vector<8x128xf32>
    %56 = arith.mulf %55, %22 : vector<8x128xf32>
    %57 = vector.broadcast %39 : f32 to vector<8x128xf32>
    %58 = arith.mulf %57, %30 : vector<8x128xf32>
    %59 = arith.addf %56, %58 : vector<8x128xf32>
    %60 = vector.broadcast %40 : f32 to vector<8x128xf32>
    %61 = arith.addf %59, %60 : vector<8x128xf32>
    %62 = arith.minimumf %54, %61 : vector<8x128xf32>
    %63 = arith.minimumf %47, %62 : vector<8x128xf32>
    %64 = arith.maximumf %31, %63 : vector<8x128xf32>
    %c9 = arith.constant 9 : index
    %65 = memref.load %arg1[%c9] : memref<108xf32, #tpu.memory_space<smem>>
    %c10 = arith.constant 10 : index
    %66 = memref.load %arg1[%c10] : memref<108xf32, #tpu.memory_space<smem>>
    %c11 = arith.constant 11 : index
    %67 = memref.load %arg1[%c11] : memref<108xf32, #tpu.memory_space<smem>>
    %c12 = arith.constant 12 : index
    %68 = memref.load %arg1[%c12] : memref<108xf32, #tpu.memory_space<smem>>
    %c13 = arith.constant 13 : index
    %69 = memref.load %arg1[%c13] : memref<108xf32, #tpu.memory_space<smem>>
    %c14 = arith.constant 14 : index
    %70 = memref.load %arg1[%c14] : memref<108xf32, #tpu.memory_space<smem>>
    %c15 = arith.constant 15 : index
    %71 = memref.load %arg1[%c15] : memref<108xf32, #tpu.memory_space<smem>>
    %c16 = arith.constant 16 : index
    %72 = memref.load %arg1[%c16] : memref<108xf32, #tpu.memory_space<smem>>
    %c17 = arith.constant 17 : index
    %73 = memref.load %arg1[%c17] : memref<108xf32, #tpu.memory_space<smem>>
    %74 = vector.broadcast %65 : f32 to vector<8x128xf32>
    %75 = arith.mulf %74, %22 : vector<8x128xf32>
    %76 = vector.broadcast %66 : f32 to vector<8x128xf32>
    %77 = arith.mulf %76, %30 : vector<8x128xf32>
    %78 = arith.addf %75, %77 : vector<8x128xf32>
    %79 = vector.broadcast %67 : f32 to vector<8x128xf32>
    %80 = arith.addf %78, %79 : vector<8x128xf32>
    %81 = vector.broadcast %68 : f32 to vector<8x128xf32>
    %82 = arith.mulf %81, %22 : vector<8x128xf32>
    %83 = vector.broadcast %69 : f32 to vector<8x128xf32>
    %84 = arith.mulf %83, %30 : vector<8x128xf32>
    %85 = arith.addf %82, %84 : vector<8x128xf32>
    %86 = vector.broadcast %70 : f32 to vector<8x128xf32>
    %87 = arith.addf %85, %86 : vector<8x128xf32>
    %88 = vector.broadcast %71 : f32 to vector<8x128xf32>
    %89 = arith.mulf %88, %22 : vector<8x128xf32>
    %90 = vector.broadcast %72 : f32 to vector<8x128xf32>
    %91 = arith.mulf %90, %30 : vector<8x128xf32>
    %92 = arith.addf %89, %91 : vector<8x128xf32>
    %93 = vector.broadcast %73 : f32 to vector<8x128xf32>
    %94 = arith.addf %92, %93 : vector<8x128xf32>
    %95 = arith.minimumf %87, %94 : vector<8x128xf32>
    %96 = arith.minimumf %80, %95 : vector<8x128xf32>
    %97 = arith.maximumf %31, %96 : vector<8x128xf32>
    %c18 = arith.constant 18 : index
    %98 = memref.load %arg1[%c18] : memref<108xf32, #tpu.memory_space<smem>>
    %c19 = arith.constant 19 : index
    %99 = memref.load %arg1[%c19] : memref<108xf32, #tpu.memory_space<smem>>
    %c20 = arith.constant 20 : index
    %100 = memref.load %arg1[%c20] : memref<108xf32, #tpu.memory_space<smem>>
    %c21 = arith.constant 21 : index
    %101 = memref.load %arg1[%c21] : memref<108xf32, #tpu.memory_space<smem>>
    %c22 = arith.constant 22 : index
    %102 = memref.load %arg1[%c22] : memref<108xf32, #tpu.memory_space<smem>>
    %c23 = arith.constant 23 : index
    %103 = memref.load %arg1[%c23] : memref<108xf32, #tpu.memory_space<smem>>
    %c24 = arith.constant 24 : index
    %104 = memref.load %arg1[%c24] : memref<108xf32, #tpu.memory_space<smem>>
    %c25 = arith.constant 25 : index
    %105 = memref.load %arg1[%c25] : memref<108xf32, #tpu.memory_space<smem>>
    %c26 = arith.constant 26 : index
    %106 = memref.load %arg1[%c26] : memref<108xf32, #tpu.memory_space<smem>>
    %107 = vector.broadcast %98 : f32 to vector<8x128xf32>
    %108 = arith.mulf %107, %22 : vector<8x128xf32>
    %109 = vector.broadcast %99 : f32 to vector<8x128xf32>
    %110 = arith.mulf %109, %30 : vector<8x128xf32>
    %111 = arith.addf %108, %110 : vector<8x128xf32>
    %112 = vector.broadcast %100 : f32 to vector<8x128xf32>
    %113 = arith.addf %111, %112 : vector<8x128xf32>
    %114 = vector.broadcast %101 : f32 to vector<8x128xf32>
    %115 = arith.mulf %114, %22 : vector<8x128xf32>
    %116 = vector.broadcast %102 : f32 to vector<8x128xf32>
    %117 = arith.mulf %116, %30 : vector<8x128xf32>
    %118 = arith.addf %115, %117 : vector<8x128xf32>
    %119 = vector.broadcast %103 : f32 to vector<8x128xf32>
    %120 = arith.addf %118, %119 : vector<8x128xf32>
    %121 = vector.broadcast %104 : f32 to vector<8x128xf32>
    %122 = arith.mulf %121, %22 : vector<8x128xf32>
    %123 = vector.broadcast %105 : f32 to vector<8x128xf32>
    %124 = arith.mulf %123, %30 : vector<8x128xf32>
    %125 = arith.addf %122, %124 : vector<8x128xf32>
    %126 = vector.broadcast %106 : f32 to vector<8x128xf32>
    %127 = arith.addf %125, %126 : vector<8x128xf32>
    %128 = arith.minimumf %120, %127 : vector<8x128xf32>
    %129 = arith.minimumf %113, %128 : vector<8x128xf32>
    %130 = arith.maximumf %31, %129 : vector<8x128xf32>
    %c27 = arith.constant 27 : index
    %131 = memref.load %arg1[%c27] : memref<108xf32, #tpu.memory_space<smem>>
    %c28 = arith.constant 28 : index
    %132 = memref.load %arg1[%c28] : memref<108xf32, #tpu.memory_space<smem>>
    %c29 = arith.constant 29 : index
    %133 = memref.load %arg1[%c29] : memref<108xf32, #tpu.memory_space<smem>>
    %c30 = arith.constant 30 : index
    %134 = memref.load %arg1[%c30] : memref<108xf32, #tpu.memory_space<smem>>
    %c31 = arith.constant 31 : index
    %135 = memref.load %arg1[%c31] : memref<108xf32, #tpu.memory_space<smem>>
    %c32 = arith.constant 32 : index
    %136 = memref.load %arg1[%c32] : memref<108xf32, #tpu.memory_space<smem>>
    %c33 = arith.constant 33 : index
    %137 = memref.load %arg1[%c33] : memref<108xf32, #tpu.memory_space<smem>>
    %c34 = arith.constant 34 : index
    %138 = memref.load %arg1[%c34] : memref<108xf32, #tpu.memory_space<smem>>
    %c35 = arith.constant 35 : index
    %139 = memref.load %arg1[%c35] : memref<108xf32, #tpu.memory_space<smem>>
    %140 = vector.broadcast %131 : f32 to vector<8x128xf32>
    %141 = arith.mulf %140, %22 : vector<8x128xf32>
    %142 = vector.broadcast %132 : f32 to vector<8x128xf32>
    %143 = arith.mulf %142, %30 : vector<8x128xf32>
    %144 = arith.addf %141, %143 : vector<8x128xf32>
    %145 = vector.broadcast %133 : f32 to vector<8x128xf32>
    %146 = arith.addf %144, %145 : vector<8x128xf32>
    %147 = vector.broadcast %134 : f32 to vector<8x128xf32>
    %148 = arith.mulf %147, %22 : vector<8x128xf32>
    %149 = vector.broadcast %135 : f32 to vector<8x128xf32>
    %150 = arith.mulf %149, %30 : vector<8x128xf32>
    %151 = arith.addf %148, %150 : vector<8x128xf32>
    %152 = vector.broadcast %136 : f32 to vector<8x128xf32>
    %153 = arith.addf %151, %152 : vector<8x128xf32>
    %154 = vector.broadcast %137 : f32 to vector<8x128xf32>
    %155 = arith.mulf %154, %22 : vector<8x128xf32>
    %156 = vector.broadcast %138 : f32 to vector<8x128xf32>
    %157 = arith.mulf %156, %30 : vector<8x128xf32>
    %158 = arith.addf %155, %157 : vector<8x128xf32>
    %159 = vector.broadcast %139 : f32 to vector<8x128xf32>
    %160 = arith.addf %158, %159 : vector<8x128xf32>
    %161 = arith.minimumf %153, %160 : vector<8x128xf32>
    %162 = arith.minimumf %146, %161 : vector<8x128xf32>
    %163 = arith.maximumf %31, %162 : vector<8x128xf32>
    %c36 = arith.constant 36 : index
    %164 = memref.load %arg1[%c36] : memref<108xf32, #tpu.memory_space<smem>>
    %c37 = arith.constant 37 : index
    %165 = memref.load %arg1[%c37] : memref<108xf32, #tpu.memory_space<smem>>
    %c38 = arith.constant 38 : index
    %166 = memref.load %arg1[%c38] : memref<108xf32, #tpu.memory_space<smem>>
    %c39 = arith.constant 39 : index
    %167 = memref.load %arg1[%c39] : memref<108xf32, #tpu.memory_space<smem>>
    %c40 = arith.constant 40 : index
    %168 = memref.load %arg1[%c40] : memref<108xf32, #tpu.memory_space<smem>>
    %c41 = arith.constant 41 : index
    %169 = memref.load %arg1[%c41] : memref<108xf32, #tpu.memory_space<smem>>
    %c42 = arith.constant 42 : index
    %170 = memref.load %arg1[%c42] : memref<108xf32, #tpu.memory_space<smem>>
    %c43 = arith.constant 43 : index
    %171 = memref.load %arg1[%c43] : memref<108xf32, #tpu.memory_space<smem>>
    %c44 = arith.constant 44 : index
    %172 = memref.load %arg1[%c44] : memref<108xf32, #tpu.memory_space<smem>>
    %173 = vector.broadcast %164 : f32 to vector<8x128xf32>
    %174 = arith.mulf %173, %22 : vector<8x128xf32>
    %175 = vector.broadcast %165 : f32 to vector<8x128xf32>
    %176 = arith.mulf %175, %30 : vector<8x128xf32>
    %177 = arith.addf %174, %176 : vector<8x128xf32>
    %178 = vector.broadcast %166 : f32 to vector<8x128xf32>
    %179 = arith.addf %177, %178 : vector<8x128xf32>
    %180 = vector.broadcast %167 : f32 to vector<8x128xf32>
    %181 = arith.mulf %180, %22 : vector<8x128xf32>
    %182 = vector.broadcast %168 : f32 to vector<8x128xf32>
    %183 = arith.mulf %182, %30 : vector<8x128xf32>
    %184 = arith.addf %181, %183 : vector<8x128xf32>
    %185 = vector.broadcast %169 : f32 to vector<8x128xf32>
    %186 = arith.addf %184, %185 : vector<8x128xf32>
    %187 = vector.broadcast %170 : f32 to vector<8x128xf32>
    %188 = arith.mulf %187, %22 : vector<8x128xf32>
    %189 = vector.broadcast %171 : f32 to vector<8x128xf32>
    %190 = arith.mulf %189, %30 : vector<8x128xf32>
    %191 = arith.addf %188, %190 : vector<8x128xf32>
    %192 = vector.broadcast %172 : f32 to vector<8x128xf32>
    %193 = arith.addf %191, %192 : vector<8x128xf32>
    %194 = arith.minimumf %186, %193 : vector<8x128xf32>
    %195 = arith.minimumf %179, %194 : vector<8x128xf32>
    %196 = arith.maximumf %64, %195 : vector<8x128xf32>
    %c45 = arith.constant 45 : index
    %197 = memref.load %arg1[%c45] : memref<108xf32, #tpu.memory_space<smem>>
    %c46 = arith.constant 46 : index
    %198 = memref.load %arg1[%c46] : memref<108xf32, #tpu.memory_space<smem>>
    %c47 = arith.constant 47 : index
    %199 = memref.load %arg1[%c47] : memref<108xf32, #tpu.memory_space<smem>>
    %c48 = arith.constant 48 : index
    %200 = memref.load %arg1[%c48] : memref<108xf32, #tpu.memory_space<smem>>
    %c49 = arith.constant 49 : index
    %201 = memref.load %arg1[%c49] : memref<108xf32, #tpu.memory_space<smem>>
    %c50 = arith.constant 50 : index
    %202 = memref.load %arg1[%c50] : memref<108xf32, #tpu.memory_space<smem>>
    %c51 = arith.constant 51 : index
    %203 = memref.load %arg1[%c51] : memref<108xf32, #tpu.memory_space<smem>>
    %c52 = arith.constant 52 : index
    %204 = memref.load %arg1[%c52] : memref<108xf32, #tpu.memory_space<smem>>
    %c53 = arith.constant 53 : index
    %205 = memref.load %arg1[%c53] : memref<108xf32, #tpu.memory_space<smem>>
    %206 = vector.broadcast %197 : f32 to vector<8x128xf32>
    %207 = arith.mulf %206, %22 : vector<8x128xf32>
    %208 = vector.broadcast %198 : f32 to vector<8x128xf32>
    %209 = arith.mulf %208, %30 : vector<8x128xf32>
    %210 = arith.addf %207, %209 : vector<8x128xf32>
    %211 = vector.broadcast %199 : f32 to vector<8x128xf32>
    %212 = arith.addf %210, %211 : vector<8x128xf32>
    %213 = vector.broadcast %200 : f32 to vector<8x128xf32>
    %214 = arith.mulf %213, %22 : vector<8x128xf32>
    %215 = vector.broadcast %201 : f32 to vector<8x128xf32>
    %216 = arith.mulf %215, %30 : vector<8x128xf32>
    %217 = arith.addf %214, %216 : vector<8x128xf32>
    %218 = vector.broadcast %202 : f32 to vector<8x128xf32>
    %219 = arith.addf %217, %218 : vector<8x128xf32>
    %220 = vector.broadcast %203 : f32 to vector<8x128xf32>
    %221 = arith.mulf %220, %22 : vector<8x128xf32>
    %222 = vector.broadcast %204 : f32 to vector<8x128xf32>
    %223 = arith.mulf %222, %30 : vector<8x128xf32>
    %224 = arith.addf %221, %223 : vector<8x128xf32>
    %225 = vector.broadcast %205 : f32 to vector<8x128xf32>
    %226 = arith.addf %224, %225 : vector<8x128xf32>
    %227 = arith.minimumf %219, %226 : vector<8x128xf32>
    %228 = arith.minimumf %212, %227 : vector<8x128xf32>
    %229 = arith.maximumf %97, %228 : vector<8x128xf32>
    %c54 = arith.constant 54 : index
    %230 = memref.load %arg1[%c54] : memref<108xf32, #tpu.memory_space<smem>>
    %c55 = arith.constant 55 : index
    %231 = memref.load %arg1[%c55] : memref<108xf32, #tpu.memory_space<smem>>
    %c56 = arith.constant 56 : index
    %232 = memref.load %arg1[%c56] : memref<108xf32, #tpu.memory_space<smem>>
    %c57 = arith.constant 57 : index
    %233 = memref.load %arg1[%c57] : memref<108xf32, #tpu.memory_space<smem>>
    %c58 = arith.constant 58 : index
    %234 = memref.load %arg1[%c58] : memref<108xf32, #tpu.memory_space<smem>>
    %c59 = arith.constant 59 : index
    %235 = memref.load %arg1[%c59] : memref<108xf32, #tpu.memory_space<smem>>
    %c60 = arith.constant 60 : index
    %236 = memref.load %arg1[%c60] : memref<108xf32, #tpu.memory_space<smem>>
    %c61 = arith.constant 61 : index
    %237 = memref.load %arg1[%c61] : memref<108xf32, #tpu.memory_space<smem>>
    %c62 = arith.constant 62 : index
    %238 = memref.load %arg1[%c62] : memref<108xf32, #tpu.memory_space<smem>>
    %239 = vector.broadcast %230 : f32 to vector<8x128xf32>
    %240 = arith.mulf %239, %22 : vector<8x128xf32>
    %241 = vector.broadcast %231 : f32 to vector<8x128xf32>
    %242 = arith.mulf %241, %30 : vector<8x128xf32>
    %243 = arith.addf %240, %242 : vector<8x128xf32>
    %244 = vector.broadcast %232 : f32 to vector<8x128xf32>
    %245 = arith.addf %243, %244 : vector<8x128xf32>
    %246 = vector.broadcast %233 : f32 to vector<8x128xf32>
    %247 = arith.mulf %246, %22 : vector<8x128xf32>
    %248 = vector.broadcast %234 : f32 to vector<8x128xf32>
    %249 = arith.mulf %248, %30 : vector<8x128xf32>
    %250 = arith.addf %247, %249 : vector<8x128xf32>
    %251 = vector.broadcast %235 : f32 to vector<8x128xf32>
    %252 = arith.addf %250, %251 : vector<8x128xf32>
    %253 = vector.broadcast %236 : f32 to vector<8x128xf32>
    %254 = arith.mulf %253, %22 : vector<8x128xf32>
    %255 = vector.broadcast %237 : f32 to vector<8x128xf32>
    %256 = arith.mulf %255, %30 : vector<8x128xf32>
    %257 = arith.addf %254, %256 : vector<8x128xf32>
    %258 = vector.broadcast %238 : f32 to vector<8x128xf32>
    %259 = arith.addf %257, %258 : vector<8x128xf32>
    %260 = arith.minimumf %252, %259 : vector<8x128xf32>
    %261 = arith.minimumf %245, %260 : vector<8x128xf32>
    %262 = arith.maximumf %130, %261 : vector<8x128xf32>
    %c63 = arith.constant 63 : index
    %263 = memref.load %arg1[%c63] : memref<108xf32, #tpu.memory_space<smem>>
    %c64 = arith.constant 64 : index
    %264 = memref.load %arg1[%c64] : memref<108xf32, #tpu.memory_space<smem>>
    %c65 = arith.constant 65 : index
    %265 = memref.load %arg1[%c65] : memref<108xf32, #tpu.memory_space<smem>>
    %c66 = arith.constant 66 : index
    %266 = memref.load %arg1[%c66] : memref<108xf32, #tpu.memory_space<smem>>
    %c67 = arith.constant 67 : index
    %267 = memref.load %arg1[%c67] : memref<108xf32, #tpu.memory_space<smem>>
    %c68 = arith.constant 68 : index
    %268 = memref.load %arg1[%c68] : memref<108xf32, #tpu.memory_space<smem>>
    %c69 = arith.constant 69 : index
    %269 = memref.load %arg1[%c69] : memref<108xf32, #tpu.memory_space<smem>>
    %c70 = arith.constant 70 : index
    %270 = memref.load %arg1[%c70] : memref<108xf32, #tpu.memory_space<smem>>
    %c71 = arith.constant 71 : index
    %271 = memref.load %arg1[%c71] : memref<108xf32, #tpu.memory_space<smem>>
    %272 = vector.broadcast %263 : f32 to vector<8x128xf32>
    %273 = arith.mulf %272, %22 : vector<8x128xf32>
    %274 = vector.broadcast %264 : f32 to vector<8x128xf32>
    %275 = arith.mulf %274, %30 : vector<8x128xf32>
    %276 = arith.addf %273, %275 : vector<8x128xf32>
    %277 = vector.broadcast %265 : f32 to vector<8x128xf32>
    %278 = arith.addf %276, %277 : vector<8x128xf32>
    %279 = vector.broadcast %266 : f32 to vector<8x128xf32>
    %280 = arith.mulf %279, %22 : vector<8x128xf32>
    %281 = vector.broadcast %267 : f32 to vector<8x128xf32>
    %282 = arith.mulf %281, %30 : vector<8x128xf32>
    %283 = arith.addf %280, %282 : vector<8x128xf32>
    %284 = vector.broadcast %268 : f32 to vector<8x128xf32>
    %285 = arith.addf %283, %284 : vector<8x128xf32>
    %286 = vector.broadcast %269 : f32 to vector<8x128xf32>
    %287 = arith.mulf %286, %22 : vector<8x128xf32>
    %288 = vector.broadcast %270 : f32 to vector<8x128xf32>
    %289 = arith.mulf %288, %30 : vector<8x128xf32>
    %290 = arith.addf %287, %289 : vector<8x128xf32>
    %291 = vector.broadcast %271 : f32 to vector<8x128xf32>
    %292 = arith.addf %290, %291 : vector<8x128xf32>
    %293 = arith.minimumf %285, %292 : vector<8x128xf32>
    %294 = arith.minimumf %278, %293 : vector<8x128xf32>
    %295 = arith.maximumf %163, %294 : vector<8x128xf32>
    %c72 = arith.constant 72 : index
    %296 = memref.load %arg1[%c72] : memref<108xf32, #tpu.memory_space<smem>>
    %c73 = arith.constant 73 : index
    %297 = memref.load %arg1[%c73] : memref<108xf32, #tpu.memory_space<smem>>
    %c74 = arith.constant 74 : index
    %298 = memref.load %arg1[%c74] : memref<108xf32, #tpu.memory_space<smem>>
    %c75 = arith.constant 75 : index
    %299 = memref.load %arg1[%c75] : memref<108xf32, #tpu.memory_space<smem>>
    %c76 = arith.constant 76 : index
    %300 = memref.load %arg1[%c76] : memref<108xf32, #tpu.memory_space<smem>>
    %c77 = arith.constant 77 : index
    %301 = memref.load %arg1[%c77] : memref<108xf32, #tpu.memory_space<smem>>
    %c78 = arith.constant 78 : index
    %302 = memref.load %arg1[%c78] : memref<108xf32, #tpu.memory_space<smem>>
    %c79 = arith.constant 79 : index
    %303 = memref.load %arg1[%c79] : memref<108xf32, #tpu.memory_space<smem>>
    %c80 = arith.constant 80 : index
    %304 = memref.load %arg1[%c80] : memref<108xf32, #tpu.memory_space<smem>>
    %305 = vector.broadcast %296 : f32 to vector<8x128xf32>
    %306 = arith.mulf %305, %22 : vector<8x128xf32>
    %307 = vector.broadcast %297 : f32 to vector<8x128xf32>
    %308 = arith.mulf %307, %30 : vector<8x128xf32>
    %309 = arith.addf %306, %308 : vector<8x128xf32>
    %310 = vector.broadcast %298 : f32 to vector<8x128xf32>
    %311 = arith.addf %309, %310 : vector<8x128xf32>
    %312 = vector.broadcast %299 : f32 to vector<8x128xf32>
    %313 = arith.mulf %312, %22 : vector<8x128xf32>
    %314 = vector.broadcast %300 : f32 to vector<8x128xf32>
    %315 = arith.mulf %314, %30 : vector<8x128xf32>
    %316 = arith.addf %313, %315 : vector<8x128xf32>
    %317 = vector.broadcast %301 : f32 to vector<8x128xf32>
    %318 = arith.addf %316, %317 : vector<8x128xf32>
    %319 = vector.broadcast %302 : f32 to vector<8x128xf32>
    %320 = arith.mulf %319, %22 : vector<8x128xf32>
    %321 = vector.broadcast %303 : f32 to vector<8x128xf32>
    %322 = arith.mulf %321, %30 : vector<8x128xf32>
    %323 = arith.addf %320, %322 : vector<8x128xf32>
    %324 = vector.broadcast %304 : f32 to vector<8x128xf32>
    %325 = arith.addf %323, %324 : vector<8x128xf32>
    %326 = arith.minimumf %318, %325 : vector<8x128xf32>
    %327 = arith.minimumf %311, %326 : vector<8x128xf32>
    %328 = arith.maximumf %196, %327 : vector<8x128xf32>
    %c81 = arith.constant 81 : index
    %329 = memref.load %arg1[%c81] : memref<108xf32, #tpu.memory_space<smem>>
    %c82 = arith.constant 82 : index
    %330 = memref.load %arg1[%c82] : memref<108xf32, #tpu.memory_space<smem>>
    %c83 = arith.constant 83 : index
    %331 = memref.load %arg1[%c83] : memref<108xf32, #tpu.memory_space<smem>>
    %c84 = arith.constant 84 : index
    %332 = memref.load %arg1[%c84] : memref<108xf32, #tpu.memory_space<smem>>
    %c85 = arith.constant 85 : index
    %333 = memref.load %arg1[%c85] : memref<108xf32, #tpu.memory_space<smem>>
    %c86 = arith.constant 86 : index
    %334 = memref.load %arg1[%c86] : memref<108xf32, #tpu.memory_space<smem>>
    %c87 = arith.constant 87 : index
    %335 = memref.load %arg1[%c87] : memref<108xf32, #tpu.memory_space<smem>>
    %c88 = arith.constant 88 : index
    %336 = memref.load %arg1[%c88] : memref<108xf32, #tpu.memory_space<smem>>
    %c89 = arith.constant 89 : index
    %337 = memref.load %arg1[%c89] : memref<108xf32, #tpu.memory_space<smem>>
    %338 = vector.broadcast %329 : f32 to vector<8x128xf32>
    %339 = arith.mulf %338, %22 : vector<8x128xf32>
    %340 = vector.broadcast %330 : f32 to vector<8x128xf32>
    %341 = arith.mulf %340, %30 : vector<8x128xf32>
    %342 = arith.addf %339, %341 : vector<8x128xf32>
    %343 = vector.broadcast %331 : f32 to vector<8x128xf32>
    %344 = arith.addf %342, %343 : vector<8x128xf32>
    %345 = vector.broadcast %332 : f32 to vector<8x128xf32>
    %346 = arith.mulf %345, %22 : vector<8x128xf32>
    %347 = vector.broadcast %333 : f32 to vector<8x128xf32>
    %348 = arith.mulf %347, %30 : vector<8x128xf32>
    %349 = arith.addf %346, %348 : vector<8x128xf32>
    %350 = vector.broadcast %334 : f32 to vector<8x128xf32>
    %351 = arith.addf %349, %350 : vector<8x128xf32>
    %352 = vector.broadcast %335 : f32 to vector<8x128xf32>
    %353 = arith.mulf %352, %22 : vector<8x128xf32>
    %354 = vector.broadcast %336 : f32 to vector<8x128xf32>
    %355 = arith.mulf %354, %30 : vector<8x128xf32>
    %356 = arith.addf %353, %355 : vector<8x128xf32>
    %357 = vector.broadcast %337 : f32 to vector<8x128xf32>
    %358 = arith.addf %356, %357 : vector<8x128xf32>
    %359 = arith.minimumf %351, %358 : vector<8x128xf32>
    %360 = arith.minimumf %344, %359 : vector<8x128xf32>
    %361 = arith.maximumf %229, %360 : vector<8x128xf32>
    %c90 = arith.constant 90 : index
    %362 = memref.load %arg1[%c90] : memref<108xf32, #tpu.memory_space<smem>>
    %c91 = arith.constant 91 : index
    %363 = memref.load %arg1[%c91] : memref<108xf32, #tpu.memory_space<smem>>
    %c92 = arith.constant 92 : index
    %364 = memref.load %arg1[%c92] : memref<108xf32, #tpu.memory_space<smem>>
    %c93 = arith.constant 93 : index
    %365 = memref.load %arg1[%c93] : memref<108xf32, #tpu.memory_space<smem>>
    %c94 = arith.constant 94 : index
    %366 = memref.load %arg1[%c94] : memref<108xf32, #tpu.memory_space<smem>>
    %c95 = arith.constant 95 : index
    %367 = memref.load %arg1[%c95] : memref<108xf32, #tpu.memory_space<smem>>
    %c96 = arith.constant 96 : index
    %368 = memref.load %arg1[%c96] : memref<108xf32, #tpu.memory_space<smem>>
    %c97 = arith.constant 97 : index
    %369 = memref.load %arg1[%c97] : memref<108xf32, #tpu.memory_space<smem>>
    %c98 = arith.constant 98 : index
    %370 = memref.load %arg1[%c98] : memref<108xf32, #tpu.memory_space<smem>>
    %371 = vector.broadcast %362 : f32 to vector<8x128xf32>
    %372 = arith.mulf %371, %22 : vector<8x128xf32>
    %373 = vector.broadcast %363 : f32 to vector<8x128xf32>
    %374 = arith.mulf %373, %30 : vector<8x128xf32>
    %375 = arith.addf %372, %374 : vector<8x128xf32>
    %376 = vector.broadcast %364 : f32 to vector<8x128xf32>
    %377 = arith.addf %375, %376 : vector<8x128xf32>
    %378 = vector.broadcast %365 : f32 to vector<8x128xf32>
    %379 = arith.mulf %378, %22 : vector<8x128xf32>
    %380 = vector.broadcast %366 : f32 to vector<8x128xf32>
    %381 = arith.mulf %380, %30 : vector<8x128xf32>
    %382 = arith.addf %379, %381 : vector<8x128xf32>
    %383 = vector.broadcast %367 : f32 to vector<8x128xf32>
    %384 = arith.addf %382, %383 : vector<8x128xf32>
    %385 = vector.broadcast %368 : f32 to vector<8x128xf32>
    %386 = arith.mulf %385, %22 : vector<8x128xf32>
    %387 = vector.broadcast %369 : f32 to vector<8x128xf32>
    %388 = arith.mulf %387, %30 : vector<8x128xf32>
    %389 = arith.addf %386, %388 : vector<8x128xf32>
    %390 = vector.broadcast %370 : f32 to vector<8x128xf32>
    %391 = arith.addf %389, %390 : vector<8x128xf32>
    %392 = arith.minimumf %384, %391 : vector<8x128xf32>
    %393 = arith.minimumf %377, %392 : vector<8x128xf32>
    %394 = arith.maximumf %262, %393 : vector<8x128xf32>
    %c99 = arith.constant 99 : index
    %395 = memref.load %arg1[%c99] : memref<108xf32, #tpu.memory_space<smem>>
    %c100 = arith.constant 100 : index
    %396 = memref.load %arg1[%c100] : memref<108xf32, #tpu.memory_space<smem>>
    %c101 = arith.constant 101 : index
    %397 = memref.load %arg1[%c101] : memref<108xf32, #tpu.memory_space<smem>>
    %c102 = arith.constant 102 : index
    %398 = memref.load %arg1[%c102] : memref<108xf32, #tpu.memory_space<smem>>
    %c103 = arith.constant 103 : index
    %399 = memref.load %arg1[%c103] : memref<108xf32, #tpu.memory_space<smem>>
    %c104 = arith.constant 104 : index
    %400 = memref.load %arg1[%c104] : memref<108xf32, #tpu.memory_space<smem>>
    %c105 = arith.constant 105 : index
    %401 = memref.load %arg1[%c105] : memref<108xf32, #tpu.memory_space<smem>>
    %c106 = arith.constant 106 : index
    %402 = memref.load %arg1[%c106] : memref<108xf32, #tpu.memory_space<smem>>
    %c107 = arith.constant 107 : index
    %403 = memref.load %arg1[%c107] : memref<108xf32, #tpu.memory_space<smem>>
    %404 = vector.broadcast %395 : f32 to vector<8x128xf32>
    %405 = arith.mulf %404, %22 : vector<8x128xf32>
    %406 = vector.broadcast %396 : f32 to vector<8x128xf32>
    %407 = arith.mulf %406, %30 : vector<8x128xf32>
    %408 = arith.addf %405, %407 : vector<8x128xf32>
    %409 = vector.broadcast %397 : f32 to vector<8x128xf32>
    %410 = arith.addf %408, %409 : vector<8x128xf32>
    %411 = vector.broadcast %398 : f32 to vector<8x128xf32>
    %412 = arith.mulf %411, %22 : vector<8x128xf32>
    %413 = vector.broadcast %399 : f32 to vector<8x128xf32>
    %414 = arith.mulf %413, %30 : vector<8x128xf32>
    %415 = arith.addf %412, %414 : vector<8x128xf32>
    %416 = vector.broadcast %400 : f32 to vector<8x128xf32>
    %417 = arith.addf %415, %416 : vector<8x128xf32>
    %418 = vector.broadcast %401 : f32 to vector<8x128xf32>
    %419 = arith.mulf %418, %22 : vector<8x128xf32>
    %420 = vector.broadcast %402 : f32 to vector<8x128xf32>
    %421 = arith.mulf %420, %30 : vector<8x128xf32>
    %422 = arith.addf %419, %421 : vector<8x128xf32>
    %423 = vector.broadcast %403 : f32 to vector<8x128xf32>
    %424 = arith.addf %422, %423 : vector<8x128xf32>
    %425 = arith.minimumf %417, %424 : vector<8x128xf32>
    %426 = arith.minimumf %410, %425 : vector<8x128xf32>
    %427 = arith.maximumf %295, %426 : vector<8x128xf32>
    %428 = arith.maximumf %328, %361 : vector<8x128xf32>
    %429 = arith.maximumf %428, %394 : vector<8x128xf32>
    %430 = arith.maximumf %429, %427 : vector<8x128xf32>
    %cst_10 = arith.constant 0.000000e+00 : f32
    %431 = vector.broadcast %cst_10 : f32 to vector<8x128xf32>
    %432 = arith.cmpf oge, %430, %431 : vector<8x128xf32>
    %433 = arith.extui %432 : vector<8x128xi1> to vector<8x128xi32>
    %434 = arith.sitofp %433 : vector<8x128xi32> to vector<8x128xf32>
    %c0_11 = arith.constant 0 : index
    %c0_12 = arith.constant 0 : index
    %435 = vector.load %arg2[%c0_11, %c0_12] : memref<8x128xf32, #tpu.memory_space<vmem>>, vector<8x128xf32>
    %436 = arith.mulf %434, %435 : vector<8x128xf32>
    %437 = vector.shape_cast %436 : vector<8x128xf32> to vector<1x8x128xf32>
    %cst_13 = arith.constant dense<0.000000e+00> : vector<1xf32>
    %438 = vector.multi_reduction <add>, %437, %cst_13 [1, 2] : vector<1x8x128xf32> to vector<1xf32>
    %439 = vector.shape_cast %438 : vector<1xf32> to vector<1x1x1xf32>
    %440 = vector.extract %439[0, 0, 0] : f32 from vector<1x1x1xf32>
    %441 = vector.shape_cast %434 : vector<8x128xf32> to vector<1x8x128xf32>
    %cst_14 = arith.constant dense<0.000000e+00> : vector<1xf32>
    %442 = vector.multi_reduction <add>, %441, %cst_14 [1, 2] : vector<1x8x128xf32> to vector<1xf32>
    %443 = vector.shape_cast %442 : vector<1xf32> to vector<1x1x1xf32>
    %444 = vector.extract %443[0, 0, 0] : f32 from vector<1x1x1xf32>
    %445 = tpu.iota {dimensions = array<i32: 2>} : vector<1x8x128xi32>
    %446 = vector.shape_cast %435 : vector<8x128xf32> to vector<1x8x128xf32>
    %cst_15 = arith.constant dense<0.000000e+00> : vector<1xf32>
    %447 = vector.multi_reduction <add>, %446, %cst_15 [1, 2] : vector<1x8x128xf32> to vector<1xf32>
    %448 = vector.shape_cast %447 : vector<1xf32> to vector<1x1x1xf32>
    %449 = vector.extract %448[0, 0, 0] : f32 from vector<1x1x1xf32>
    %450 = arith.addf %444, %449 : f32
    %451 = arith.subf %450, %440 : f32
    %cst_16 = arith.constant 0.000000e+00 : f32
    %452 = arith.cmpf ogt, %451, %cst_16 : f32
    %cst_17 = arith.constant 0.000000e+00 : f32
    %453 = arith.subf %cst_17, %440 : f32
    %454 = arith.divf %453, %451 : f32
    %cst_18 = arith.constant 0.000000e+00 : f32
    %455 = arith.select %452, %454, %cst_18 : f32
    %c0_i32 = arith.constant 0 : i32
    %456 = vector.broadcast %c0_i32 : i32 to vector<1x8x128xi32>
    %457 = arith.cmpi eq, %445, %456 : vector<1x8x128xi32>
    %cst_19 = arith.constant 0.000000e+00 : f32
    %458 = vector.broadcast %455 : f32 to vector<1x8x128xf32>
    %459 = vector.broadcast %cst_19 : f32 to vector<1x8x128xf32>
    %460 = arith.select %457, %458, %459 : vector<1x8x128xi1>, vector<1x8x128xf32>
    %c0_20 = arith.constant 0 : index
    %c0_21 = arith.constant 0 : index
    %c0_22 = arith.constant 0 : index
    %461 = vector.load %arg3[%c0_20, %c0_21, %c0_22] : memref<1x8x128xf32, #tpu.memory_space<vmem>>, vector<1x8x128xf32>
    tpu.vector_store %arg3[%c0_20, %c0_21, %c0_22], %460 {strides = array<i32>} : memref<1x8x128xf32, #tpu.memory_space<vmem>>, vector<1x8x128xf32>,
    return
  }
  func.func @transform_0(%arg0: i32, %arg1: memref<108xf32, #tpu.memory_space<smem>>) -> (i32, i32) {
    %c0_i32 = arith.constant 0 : i32
    %c0_i32_0 = arith.constant 0 : i32
    return %arg0, %c0_i32 : i32, i32
  }
  func.func @transform_1(%arg0: i32, %arg1: memref<108xf32, #tpu.memory_space<smem>>) -> (i32, i32, i32) {
    %c0_i32 = arith.constant 0 : i32
    %c0_i32_0 = arith.constant 0 : i32
    %c0_i32_1 = arith.constant 0 : i32
    return %arg0, %c0_i32, %c0_i32_0 : i32, i32, i32
  }
}

</mosaic_0001>

<llo_original>
// kernel: model_forward.1
$region0: #{model_forward.1}
  #allocation0 [shape = 'u32[]', space=smem, size = 0x4, offset = 0x4, fixed_abs, tag = 'smem constant byte address 0x4 - core index']
  #allocation1 [shape = 'u32[144,128]{1,0:T(1,128)}', space=vmem, size = 0x12000, scoped, tag = 'internal scratch']
  #allocation2 [shape = 's32[1]{0}', space=sflag, size = 0x4, scoped, tag = 'scoped memory for model_forward.1']
  #allocation3 [shape = 'u8[512]{0}', space=smem, size = 0x200, scoped, tag = 'prefetched SMEM operand 0']
  %s0 = inlined_call_operand.vmem [shape: f32[108], index: 0, kind: input, shape index: {}]
  %s1 = inlined_call_operand.vmem [shape: f32[8,128], index: 1, kind: input, shape index: {}]
  %s2 = inlined_call_operand.vmem [shape: f32[1,8,128], index: 2, kind: output, shape index: {}]
  %s3 = sld [smem:[#allocation0]]
  $region14: #{model_forward.1} parent=0
    _
  %s5 = ssub.s32 1, %s3
  %s6 = scalar_select 0, %s5, %s3
  %s7 = sshll.u32 %s0, 4
  %s8 = int_to_ptr.vmem [resolvable:$true] %s7
  %10 = dma.vmem_to_smem %s8, 16, [#allocation3], [#allocation2]
  %11 = dma.done [#allocation2], 16
  %12 = sfence
  // Predicated region
  $region2: #{model_forward.1} parent=0 // pred_check
    _
  $region3: #{model_forward.1} parent=0 // pred_check_branch
    %14 = sbr.rel (0) target = $region5
  $region4: #{model_forward.1} parent=0 // pred_region
    _
  $region5: #{model_forward.1} parent=0 // pred_fallthru
    _
  %v15 = vlaneseq
  %v16 = vshrl.u32 %v15, 7
  %v17 = vlaneseq
  %v18 = vand.u32 %v17, 127
  %s19 = smul.u32 0, 8
  %v20 = vstv %s19
  %v21 = vadd.s32 %v20, %v16
  %v22 = vmul.u32 %v21, 128
  %v23 = vadd.s32 %v22, %v18
  %v24 = vcvt.s32.f32 %v23
  %v25 = vrcp.pop 32.0
  %v26 = vmul.f32 %v24, %v25
  %v27 = vfloor.f32 %v26
  %v28 = vmul.f32 %v27, 32.0
  %v29 = vsub.f32 %v24, %v28
  %v30 = vmul.f32 %v29, 2.0
  %v31 = vadd.f32 %v30, 1.0
  %v32 = vsub.f32 %v31, 32.0
  %v33 = vmul.f32 %v32, %v25
  %v34 = vmul.f32 %v27, 2.0
  %v35 = vadd.f32 %v34, 1.0
  %v36 = vsub.f32 %v35, 32.0
  %v37 = vmul.f32 %v36, %v25
  %s38 = sld [smem:[#allocation3]]
  %s39 = sld [smem:[#allocation3 + $0x1]]
  %s40 = sld [smem:[#allocation3 + $0x2]]
  %s41 = sld [smem:[#allocation3 + $0x3]]
  %s42 = sld [smem:[#allocation3 + $0x4]]
  %s43 = sld [smem:[#allocation3 + $0x5]]
  %s44 = sld [smem:[#allocation3 + $0x6]]
  %s45 = sld [smem:[#allocation3 + $0x7]]
  %s46 = sld [smem:[#allocation3 + $0x8]]
  %v47 = vstv %s38
  %v48 = vmul.f32 %v47, %v33
  %v49 = vstv %s39
  %v50 = vmul.f32 %v49, %v37
  %v51 = vadd.f32 %v48, %v50
  %v52 = vstv %s40
  %v53 = vadd.f32 %v51, %v52
  %v54 = vstv %s41
  %v55 = vmul.f32 %v54, %v33
  %v56 = vstv %s42
  %v57 = vmul.f32 %v56, %v37
  %v58 = vadd.f32 %v55, %v57
  %v59 = vstv %s43
  %v60 = vadd.f32 %v58, %v59
  %v61 = vstv %s44
  %v62 = vmul.f32 %v61, %v33
  %v63 = vstv %s45
  %v64 = vmul.f32 %v63, %v37
  %v65 = vadd.f32 %v62, %v64
  %v66 = vstv %s46
  %v67 = vadd.f32 %v65, %v66
  %v68 = vmin.f32 %v60, %v67
  %v69 = vmin.f32 %v53, %v68
  %v70 = vmax.f32 %v69, -1.0
  %s71 = sld [smem:[#allocation3 + $0x9]]
  %s72 = sld [smem:[#allocation3 + $0xa]]
  %s73 = sld [smem:[#allocation3 + $0xb]]
  %s74 = sld [smem:[#allocation3 + $0xc]]
  %s75 = sld [smem:[#allocation3 + $0xd]]
  %s76 = sld [smem:[#allocation3 + $0xe]]
  %s77 = sld [smem:[#allocation3 + $0xf]]
  %s78 = sld [smem:[#allocation3 + $0x10]]
  %s79 = sld [smem:[#allocation3 + $0x11]]
  %v80 = vstv %s71
  %v81 = vmul.f32 %v80, %v33
  %v82 = vstv %s72
  %v83 = vmul.f32 %v82, %v37
  %v84 = vadd.f32 %v81, %v83
  %v85 = vstv %s73
  %v86 = vadd.f32 %v84, %v85
  %v87 = vstv %s74
  %v88 = vmul.f32 %v87, %v33
  %v89 = vstv %s75
  %v90 = vmul.f32 %v89, %v37
  %v91 = vadd.f32 %v88, %v90
  %v92 = vstv %s76
  %v93 = vadd.f32 %v91, %v92
  %v94 = vstv %s77
  %v95 = vmul.f32 %v94, %v33
  %v96 = vstv %s78
  %v97 = vmul.f32 %v96, %v37
  %v98 = vadd.f32 %v95, %v97
  %v99 = vstv %s79
  %v100 = vadd.f32 %v98, %v99
  %v101 = vmin.f32 %v93, %v100
  %v102 = vmin.f32 %v86, %v101
  %v103 = vmax.f32 %v102, -1.0
  %s104 = sld [smem:[#allocation3 + $0x12]]
  %s105 = sld [smem:[#allocation3 + $0x13]]
  %s106 = sld [smem:[#allocation3 + $0x14]]
  %s107 = sld [smem:[#allocation3 + $0x15]]
  %s108 = sld [smem:[#allocation3 + $0x16]]
  %s109 = sld [smem:[#allocation3 + $0x17]]
  %s110 = sld [smem:[#allocation3 + $0x18]]
  %s111 = sld [smem:[#allocation3 + $0x19]]
  %s112 = sld [smem:[#allocation3 + $0x1a]]
  %v113 = vstv %s104
  %v114 = vmul.f32 %v113, %v33
  %v115 = vstv %s105
  %v116 = vmul.f32 %v115, %v37
  %v117 = vadd.f32 %v114, %v116
  %v118 = vstv %s106
  %v119 = vadd.f32 %v117, %v118
  %v120 = vstv %s107
  %v121 = vmul.f32 %v120, %v33
  %v122 = vstv %s108
  %v123 = vmul.f32 %v122, %v37
  %v124 = vadd.f32 %v121, %v123
  %v125 = vstv %s109
  %v126 = vadd.f32 %v124, %v125
  %v127 = vstv %s110
  %v128 = vmul.f32 %v127, %v33
  %v129 = vstv %s111
  %v130 = vmul.f32 %v129, %v37
  %v131 = vadd.f32 %v128, %v130
  %v132 = vstv %s112
  %v133 = vadd.f32 %v131, %v132
  %v134 = vmin.f32 %v126, %v133
  %v135 = vmin.f32 %v119, %v134
  %v136 = vmax.f32 %v135, -1.0
  %s137 = sld [smem:[#allocation3 + $0x1b]]
  %s138 = sld [smem:[#allocation3 + $0x1c]]
  %s139 = sld [smem:[#allocation3 + $0x1d]]
  %s140 = sld [smem:[#allocation3 + $0x1e]]
  %s141 = sld [smem:[#allocation3 + $0x1f]]
  %s142 = sld [smem:[#allocation3 + $0x20]]
  %s143 = sld [smem:[#allocation3 + $0x21]]
  %s144 = sld [smem:[#allocation3 + $0x22]]
  %s145 = sld [smem:[#allocation3 + $0x23]]
  %v146 = vstv %s137
  %v147 = vmul.f32 %v146, %v33
  %v148 = vstv %s138
  %v149 = vmul.f32 %v148, %v37
  %v150 = vadd.f32 %v147, %v149
  %v151 = vstv %s139
  %v152 = vadd.f32 %v150, %v151
  %v153 = vstv %s140
  %v154 = vmul.f32 %v153, %v33
  %v155 = vstv %s141
  %v156 = vmul.f32 %v155, %v37
  %v157 = vadd.f32 %v154, %v156
  %v158 = vstv %s142
  %v159 = vadd.f32 %v157, %v158
  %v160 = vstv %s143
  %v161 = vmul.f32 %v160, %v33
  %v162 = vstv %s144
  %v163 = vmul.f32 %v162, %v37
  %v164 = vadd.f32 %v161, %v163
  %v165 = vstv %s145
  %v166 = vadd.f32 %v164, %v165
  %v167 = vmin.f32 %v159, %v166
  %v168 = vmin.f32 %v152, %v167
  %v169 = vmax.f32 %v168, -1.0
  %s170 = sld [smem:[#allocation3 + $0x24]]
  %s171 = sld [smem:[#allocation3 + $0x25]]
  %s172 = sld [smem:[#allocation3 + $0x26]]
  %s173 = sld [smem:[#allocation3 + $0x27]]
  %s174 = sld [smem:[#allocation3 + $0x28]]
  %s175 = sld [smem:[#allocation3 + $0x29]]
  %s176 = sld [smem:[#allocation3 + $0x2a]]
  %s177 = sld [smem:[#allocation3 + $0x2b]]
  %s178 = sld [smem:[#allocation3 + $0x2c]]
  %v179 = vstv %s170
  %v180 = vmul.f32 %v179, %v33
  %v181 = vstv %s171
  %v182 = vmul.f32 %v181, %v37
  %v183 = vadd.f32 %v180, %v182
  %v184 = vstv %s172
  %v185 = vadd.f32 %v183, %v184
  %v186 = vstv %s173
  %v187 = vmul.f32 %v186, %v33
  %v188 = vstv %s174
  %v189 = vmul.f32 %v188, %v37
  %v190 = vadd.f32 %v187, %v189
  %v191 = vstv %s175
  %v192 = vadd.f32 %v190, %v191
  %v193 = vstv %s176
  %v194 = vmul.f32 %v193, %v33
  %v195 = vstv %s177
  %v196 = vmul.f32 %v195, %v37
  %v197 = vadd.f32 %v194, %v196
  %v198 = vstv %s178
  %v199 = vadd.f32 %v197, %v198
  %v200 = vmin.f32 %v192, %v199
  %v201 = vmin.f32 %v185, %v200
  %v202 = vmax.f32 %v70, %v201
  %s203 = sld [smem:[#allocation3 + $0x2d]]
  %s204 = sld [smem:[#allocation3 + $0x2e]]
  %s205 = sld [smem:[#allocation3 + $0x2f]]
  %s206 = sld [smem:[#allocation3 + $0x30]]
  %s207 = sld [smem:[#allocation3 + $0x31]]
  %s208 = sld [smem:[#allocation3 + $0x32]]
  %s209 = sld [smem:[#allocation3 + $0x33]]
  %s210 = sld [smem:[#allocation3 + $0x34]]
  %s211 = sld [smem:[#allocation3 + $0x35]]
  %v212 = vstv %s203
  %v213 = vmul.f32 %v212, %v33
  %v214 = vstv %s204
  %v215 = vmul.f32 %v214, %v37
  %v216 = vadd.f32 %v213, %v215
  %v217 = vstv %s205
  %v218 = vadd.f32 %v216, %v217
  %v219 = vstv %s206
  %v220 = vmul.f32 %v219, %v33
  %v221 = vstv %s207
  %v222 = vmul.f32 %v221, %v37
  %v223 = vadd.f32 %v220, %v222
  %v224 = vstv %s208
  %v225 = vadd.f32 %v223, %v224
  %v226 = vstv %s209
  %v227 = vmul.f32 %v226, %v33
  %v228 = vstv %s210
  %v229 = vmul.f32 %v228, %v37
  %v230 = vadd.f32 %v227, %v229
  %v231 = vstv %s211
  %v232 = vadd.f32 %v230, %v231
  %v233 = vmin.f32 %v225, %v232
  %v234 = vmin.f32 %v218, %v233
  %v235 = vmax.f32 %v103, %v234
  %s236 = sld [smem:[#allocation3 + $0x36]]
  %s237 = sld [smem:[#allocation3 + $0x37]]
  %s238 = sld [smem:[#allocation3 + $0x38]]
  %s239 = sld [smem:[#allocation3 + $0x39]]
  %s240 = sld [smem:[#allocation3 + $0x3a]]
  %s241 = sld [smem:[#allocation3 + $0x3b]]
  %s242 = sld [smem:[#allocation3 + $0x3c]]
  %s243 = sld [smem:[#allocation3 + $0x3d]]
  %s244 = sld [smem:[#allocation3 + $0x3e]]
  %v245 = vstv %s236
  %v246 = vmul.f32 %v245, %v33
  %v247 = vstv %s237
  %v248 = vmul.f32 %v247, %v37
  %v249 = vadd.f32 %v246, %v248
  %v250 = vstv %s238
  %v251 = vadd.f32 %v249, %v250
  %v252 = vstv %s239
  %v253 = vmul.f32 %v252, %v33
  %v254 = vstv %s240
  %v255 = vmul.f32 %v254, %v37
  %v256 = vadd.f32 %v253, %v255
  %v257 = vstv %s241
  %v258 = vadd.f32 %v256, %v257
  %v259 = vstv %s242
  %v260 = vmul.f32 %v259, %v33
  %v261 = vstv %s243
  %v262 = vmul.f32 %v261, %v37
  %v263 = vadd.f32 %v260, %v262
  %v264 = vstv %s244
  %v265 = vadd.f32 %v263, %v264
  %v266 = vmin.f32 %v258, %v265
  %v267 = vmin.f32 %v251, %v266
  %v268 = vmax.f32 %v136, %v267
  %s269 = sld [smem:[#allocation3 + $0x3f]]
  %s270 = sld [smem:[#allocation3 + $0x40]]
  %s271 = sld [smem:[#allocation3 + $0x41]]
  %s272 = sld [smem:[#allocation3 + $0x42]]
  %s273 = sld [smem:[#allocation3 + $0x43]]
  %s274 = sld [smem:[#allocation3 + $0x44]]
  %s275 = sld [smem:[#allocation3 + $0x45]]
  %s276 = sld [smem:[#allocation3 + $0x46]]
  %s277 = sld [smem:[#allocation3 + $0x47]]
  %v278 = vstv %s269
  %v279 = vmul.f32 %v278, %v33
  %v280 = vstv %s270
  %v281 = vmul.f32 %v280, %v37
  %v282 = vadd.f32 %v279, %v281
  %v283 = vstv %s271
  %v284 = vadd.f32 %v282, %v283
  %v285 = vstv %s272
  %v286 = vmul.f32 %v285, %v33
  %v287 = vstv %s273
  %v288 = vmul.f32 %v287, %v37
  %v289 = vadd.f32 %v286, %v288
  %v290 = vstv %s274
  %v291 = vadd.f32 %v289, %v290
  %v292 = vstv %s275
  %v293 = vmul.f32 %v292, %v33
  %v294 = vstv %s276
  %v295 = vmul.f32 %v294, %v37
  %v296 = vadd.f32 %v293, %v295
  %v297 = vstv %s277
  %v298 = vadd.f32 %v296, %v297
  %v299 = vmin.f32 %v291, %v298
  %v300 = vmin.f32 %v284, %v299
  %v301 = vmax.f32 %v169, %v300
  %s302 = sld [smem:[#allocation3 + $0x48]]
  %s303 = sld [smem:[#allocation3 + $0x49]]
  %s304 = sld [smem:[#allocation3 + $0x4a]]
  %s305 = sld [smem:[#allocation3 + $0x4b]]
  %s306 = sld [smem:[#allocation3 + $0x4c]]
  %s307 = sld [smem:[#allocation3 + $0x4d]]
  %s308 = sld [smem:[#allocation3 + $0x4e]]
  %s309 = sld [smem:[#allocation3 + $0x4f]]
  %s310 = sld [smem:[#allocation3 + $0x50]]
  %v311 = vstv %s302
  %v312 = vmul.f32 %v311, %v33
  %v313 = vstv %s303
  %v314 = vmul.f32 %v313, %v37
  %v315 = vadd.f32 %v312, %v314
  %v316 = vstv %s304
  %v317 = vadd.f32 %v315, %v316
  %v318 = vstv %s305
  %v319 = vmul.f32 %v318, %v33
  %v320 = vstv %s306
  %v321 = vmul.f32 %v320, %v37
  %v322 = vadd.f32 %v319, %v321
  %v323 = vstv %s307
  %v324 = vadd.f32 %v322, %v323
  %v325 = vstv %s308
  %v326 = vmul.f32 %v325, %v33
  %v327 = vstv %s309
  %v328 = vmul.f32 %v327, %v37
  %v329 = vadd.f32 %v326, %v328
  %v330 = vstv %s310
  %v331 = vadd.f32 %v329, %v330
  %v332 = vmin.f32 %v324, %v331
  %v333 = vmin.f32 %v317, %v332
  %v334 = vmax.f32 %v202, %v333
  %s335 = sld [smem:[#allocation3 + $0x51]]
  %s336 = sld [smem:[#allocation3 + $0x52]]
  %s337 = sld [smem:[#allocation3 + $0x53]]
  %s338 = sld [smem:[#allocation3 + $0x54]]
  %s339 = sld [smem:[#allocation3 + $0x55]]
  %s340 = sld [smem:[#allocation3 + $0x56]]
  %s341 = sld [smem:[#allocation3 + $0x57]]
  %s342 = sld [smem:[#allocation3 + $0x58]]
  %s343 = sld [smem:[#allocation3 + $0x59]]
  %v344 = vstv %s335
  %v345 = vmul.f32 %v344, %v33
  %v346 = vstv %s336
  %v347 = vmul.f32 %v346, %v37
  %v348 = vadd.f32 %v345, %v347
  %v349 = vstv %s337
  %v350 = vadd.f32 %v348, %v349
  %v351 = vstv %s338
  %v352 = vmul.f32 %v351, %v33
  %v353 = vstv %s339
  %v354 = vmul.f32 %v353, %v37
  %v355 = vadd.f32 %v352, %v354
  %v356 = vstv %s340
  %v357 = vadd.f32 %v355, %v356
  %v358 = vstv %s341
  %v359 = vmul.f32 %v358, %v33
  %v360 = vstv %s342
  %v361 = vmul.f32 %v360, %v37
  %v362 = vadd.f32 %v359, %v361
  %v363 = vstv %s343
  %v364 = vadd.f32 %v362, %v363
  %v365 = vmin.f32 %v357, %v364
  %v366 = vmin.f32 %v350, %v365
  %v367 = vmax.f32 %v235, %v366
  %s368 = sld [smem:[#allocation3 + $0x5a]]
  %s369 = sld [smem:[#allocation3 + $0x5b]]
  %s370 = sld [smem:[#allocation3 + $0x5c]]
  %s371 = sld [smem:[#allocation3 + $0x5d]]
  %s372 = sld [smem:[#allocation3 + $0x5e]]
  %s373 = sld [smem:[#allocation3 + $0x5f]]
  %s374 = sld [smem:[#allocation3 + $0x60]]
  %s375 = sld [smem:[#allocation3 + $0x61]]
  %s376 = sld [smem:[#allocation3 + $0x62]]
  %v377 = vstv %s368
  %v378 = vmul.f32 %v377, %v33
  %v379 = vstv %s369
  %v380 = vmul.f32 %v379, %v37
  %v381 = vadd.f32 %v378, %v380
  %v382 = vstv %s370
  %v383 = vadd.f32 %v381, %v382
  %v384 = vstv %s371
  %v385 = vmul.f32 %v384, %v33
  %v386 = vstv %s372
  %v387 = vmul.f32 %v386, %v37
  %v388 = vadd.f32 %v385, %v387
  %v389 = vstv %s373
  %v390 = vadd.f32 %v388, %v389
  %v391 = vstv %s374
  %v392 = vmul.f32 %v391, %v33
  %v393 = vstv %s375
  %v394 = vmul.f32 %v393, %v37
  %v395 = vadd.f32 %v392, %v394
  %v396 = vstv %s376
  %v397 = vadd.f32 %v395, %v396
  %v398 = vmin.f32 %v390, %v397
  %v399 = vmin.f32 %v383, %v398
  %v400 = vmax.f32 %v268, %v399
  %s401 = sld [smem:[#allocation3 + $0x63]]
  %s402 = sld [smem:[#allocation3 + $0x64]]
  %s403 = sld [smem:[#allocation3 + $0x65]]
  %s404 = sld [smem:[#allocation3 + $0x66]]
  %s405 = sld [smem:[#allocation3 + $0x67]]
  %s406 = sld [smem:[#allocation3 + $0x68]]
  %s407 = sld [smem:[#allocation3 + $0x69]]
  %s408 = sld [smem:[#allocation3 + $0x6a]]
  %s409 = sld [smem:[#allocation3 + $0x6b]]
  %v410 = vstv %s401
  %v411 = vmul.f32 %v410, %v33
  %v412 = vstv %s402
  %v413 = vmul.f32 %v412, %v37
  %v414 = vadd.f32 %v411, %v413
  %v415 = vstv %s403
  %v416 = vadd.f32 %v414, %v415
  %v417 = vstv %s404
  %v418 = vmul.f32 %v417, %v33
  %v419 = vstv %s405
  %v420 = vmul.f32 %v419, %v37
  %v421 = vadd.f32 %v418, %v420
  %v422 = vstv %s406
  %v423 = vadd.f32 %v421, %v422
  %v424 = vstv %s407
  %v425 = vmul.f32 %v424, %v33
  %v426 = vstv %s408
  %v427 = vmul.f32 %v426, %v37
  %v428 = vadd.f32 %v425, %v427
  %v429 = vstv %s409
  %v430 = vadd.f32 %v428, %v429
  %v431 = vmin.f32 %v423, %v430
  %v432 = vmin.f32 %v416, %v431
  %v433 = vmax.f32 %v301, %v432
  %v434 = vmax.f32 %v334, %v367
  %v435 = vmax.f32 %v434, %v400
  %v436 = vmax.f32 %v435, %v433
  %vm437 = vcmp.ge.f32.partialorder %v436, 0.0
  %v438 = vsel %vm437, 1, 0
  %v439 = vcvt.s32.f32 %v438
  %v440 = vld [vmem:[%s1] sm:$0xff]
  %v441 = vmul.f32 %v439, %v440
  %442 = vadd.xlane.f32.xlu0 %v441
  %v443 = vpop.xlane.xlu0 %442
  %v444 = vrot.slane %v443, 4
  %v445 = vadd.f32 %v443, %v444
  %v446 = vrot.slane %v445, 2
  %v447 = vadd.f32 %v445, %v446
  %v448 = vrot.slane %v447, 1
  %v449 = vadd.f32 %v447, %v448
  %s450 = vtos %v449
  %451 = vadd.xlane.f32.xlu0 %v439
  %v452 = vpop.xlane.xlu0 %451
  %v453 = vrot.slane %v452, 4
  %v454 = vadd.f32 %v452, %v453
  %v455 = vrot.slane %v454, 2
  %v456 = vadd.f32 %v454, %v455
  %v457 = vrot.slane %v456, 1
  %v458 = vadd.f32 %v456, %v457
  %s459 = vtos %v458
  %460 = vadd.xlane.f32.xlu0 %v440
  %v461 = vpop.xlane.xlu0 %460
  %v462 = vrot.slane %v461, 4
  %v463 = vadd.f32 %v461, %v462
  %v464 = vrot.slane %v463, 2
  %v465 = vadd.f32 %v463, %v464
  %v466 = vrot.slane %v465, 1
  %v467 = vadd.f32 %v465, %v466
  %s468 = vtos %v467
  %s469 = sadd.f32 %s459, %s468
  %s470 = ssub.f32 %s469, %s450
  %p471 = scmp.gt.f32.partialorder %s470, 0.0
  %s472 = ssub.f32 0.0, %s450
  %v473 = vstv %s470
  %v474 = vrcp.pop %v473
  %s475 = vtos %v474
  %s476 = smul.f32 %s472, %s475
  %s477 = scalar_select %p471, %s476, 0.0
  %vm478 = vcmp.eq.s32.totalorder %v18, 0
  %v479 = vstv %s477
  %v480 = vsel %vm478, %v479, 0.0
  %481 = vst [vmem:[%s2] sm:$0xff] %v480
  // Predicated region
  $region6: #{model_forward.1} parent=0 // pred_check
    _
  $region7: #{model_forward.1} parent=0 // pred_check_branch
    %483 = sbr.rel (0) target = $region9
  $region8: #{model_forward.1} parent=0 // pred_region
    _
  $region9: #{model_forward.1} parent=0 // pred_fallthru
    _
  // Predicated region
  $region10: #{model_forward.1} parent=0 // pred_check
    _
  $region11: #{model_forward.1} parent=0 // pred_check_branch
    %485 = sbr.rel (0) target = $region13
  $region12: #{model_forward.1} parent=0 // pred_region
    _
  $region13: #{model_forward.1} parent=0 // pred_fallthru
    _

</llo_original>
